<compile_context>
chip_gen: v7x
topology: tpu7x:2x2x1
jax: 0.10.0
libtpu: 0.0.40
codegen_flags: <defaults>
</compile_context>

<pallas_src>
import math

import jax
import jax.numpy as jnp
import numpy as np
from jax.experimental import pallas as pl
from jax.experimental.pallas import tpu as pltpu


# ----------------------------------------------------------------------------
# Kernels
# ----------------------------------------------------------------------------
def ffn_kernel_resident(x_ref,    # (TM, D)   f32  activation tile
                        w1t_ref,  # (D, Dff)  bf16 resident W1^T
                        b1_ref,   # (1, Dff)  f32
                        w2t_ref,  # (Dff, D)  bf16 resident W2^T
                        b2_ref,   # (1, D)    f32
                        o_ref):   # (TM, D)   f32
    # Single-chunk fast path: no accumulator scratch, write the result directly.
    x = x_ref[...].astype(jnp.bfloat16)
    h = jnp.dot(x, w1t_ref[...], preferred_element_type=jnp.float32)
    h = jnp.maximum(h + b1_ref[...], 0.0)        # threshold(x, 0, 0) == ReLU
    # relu_dropout / dropout: identity (eval mode)
    o_ref[...] = (jnp.dot(h.astype(jnp.bfloat16), w2t_ref[...],
                          preferred_element_type=jnp.float32)
                  + b2_ref[...]).astype(o_ref.dtype)


def ffn_kernel_chunked(x_ref,    # (TM, D)  f32
                       w1t_ref,  # (D, TF)  bf16 W1^T chunk
                       b1_ref,   # (1, TF)  f32
                       w2t_ref,  # (TF, D)  bf16 W2^T chunk
                       b2_ref,   # (1, D)   f32
                       o_ref,    # (TM, D)  f32
                       acc_ref): # (TM, D)  f32 accumulator, persists over chunks
    f = pl.program_id(1)

    @pl.when(f == 0)
    def _init():
        acc_ref[...] = jnp.zeros_like(acc_ref)

    x = x_ref[...].astype(jnp.bfloat16)
    h = jnp.dot(x, w1t_ref[...], preferred_element_type=jnp.float32)
    h = jnp.maximum(h + b1_ref[...], 0.0)        # ReLU; relu_dropout = identity
    acc_ref[...] += jnp.dot(h.astype(jnp.bfloat16), w2t_ref[...],
                            preferred_element_type=jnp.float32)

    @pl.when(f == pl.num_programs(1) - 1)
    def _finalize():
        # dropout: identity (eval mode)
        o_ref[...] = (acc_ref[...] + b2_ref[...]).astype(o_ref.dtype)


# ----------------------------------------------------------------------------
# Helpers
# ----------------------------------------------------------------------------
def _round_up(x, m):
    return ((x + m - 1) // m) * m


def _vmem_capacity_bytes():
    """Generation-aware physical VMEM size (fallback: v7x's 64 MiB, the
    smallest per-TC VMEM among v5e/v6e/v7x, so we never over-budget)."""
    try:
        return int(pltpu.get_tpu_info().vmem_capacity_bytes)
    except Exception:
        return 64 * 1024 * 1024


def _select_tiling(M, D, Dff, vmem_bytes):
    """Return (tm, tf, chunked).  Prefers the weights-resident path (tf == Dff,
    single reduction chunk); otherwise streams Dff in MXU-friendly chunks with
    the largest token tile that fits."""
    budget = int(0.70 * vmem_bytes)   # leave headroom for compiler scratch

    def working_set(tm, tf, chunked):
        return (2 * tm * D * 4            # x tile, f32, double-buffered
                + 2 * D * tf * 2          # W1^T chunk, bf16
                + 2 * tf * D * 2          # W2^T chunk, bf16
                + 2 * tm * D * 4          # out tile, f32
                + 2 * (tf + D) * 4        # biases
                + (tm * D * 4 if chunked else 0))   # accumulator scratch

    m16 = _round_up(max(M, 1), 16)        # bf16 vreg packs 16 sublanes
    if m16 <= 256:
        tm_cands = [m16]
    else:
        # Only candidates strictly below m16 -> >= 2 token tiles, so both v7x
        # TensorCores get work on the "parallel" axis.
        tm_cands = [t for t in (1024, 768, 512, 384, 256, 128, 64, 32, 16)
                    if t < m16] or [m16]

    # 1) weights-resident fast path
    for tm in tm_cands:
        if working_set(tm, Dff, chunked=False) <= budget:
            return tm, Dff, False

    # 2) streamed weights: largest MXU-friendly chunk dividing Dff (256
    #    multiples preferred for the 2x256x256 MXUs; 128 only as last resort),
    #    then the largest token tile that fits.
    tf = Dff
    for c in (2048, 1024, 512, 256, 128):
        if Dff % c == 0:
            tf = c
            break
    for tm in tm_cands:
        if working_set(tm, tf, chunked=True) <= budget:
            return tm, tf, True
    return tm_cands[-1], tf, True


def prepare_ffn_params(w1, b1, w2, b2):
    """Pre-transpose and bf16-cast the weights ONCE (call this outside the hot
    path / cache the result).  Doing `w.T.astype(bf16)` per forward call would
    re-materialize both weight matrices in HBM on every invocation.

    w1: (d_ffn, d_model), b1: (d_ffn,), w2: (d_model, d_ffn), b2: (d_model,)
    """
    w1 = jnp.asarray(w1)
    w2 = jnp.asarray(w2)
    Dff, D = w1.shape

    w1t = w1.T.astype(jnp.bfloat16)                       # (D, Dff)
    w2t = w2.T.astype(jnp.bfloat16)                       # (Dff, D)
    b1r = jnp.reshape(jnp.asarray(b1), (1, Dff)).astype(jnp.float32)
    b2r = jnp.reshape(jnp.asarray(b2), (1, D)).astype(jnp.float32)

    # Pad ragged, large d_ffn to a 256 multiple so the streamed path can chunk
    # it.  Zero-padded W1^T columns give h == relu(0) == 0, and the zero rows
    # of W2^T contribute nothing -> numerically identical.
    if Dff > 256 and Dff % 256 != 0:
        pad = _round_up(Dff, 256) - Dff
        w1t = jnp.pad(w1t, ((0, 0), (0, pad)))
        w2t = jnp.pad(w2t, ((0, pad), (0, 0)))
        b1r = jnp.pad(b1r, ((0, 0), (0, pad)))

    return {"w1t": w1t, "b1": b1r, "w2t": w2t, "b2": b2r}


# ----------------------------------------------------------------------------
# Forward wrapper
# ----------------------------------------------------------------------------
def ffn_forward(x, params, *, tm=None, tf=None):
    """FFN forward (eval mode).  x: (..., d_model) f32.  params: see
    prepare_ffn_params.  Returns (..., d_model) f32."""
    w1t, b1r, w2t, b2r = params["w1t"], params["b1"], params["w2t"], params["b2"]
    D, Dff = w1t.shape
    orig_shape = x.shape
    assert orig_shape[-1] == D
    M = int(np.prod(orig_shape[:-1]))

    # Flatten leading dims; stream f32 (cast to bf16 inside the kernel).
    x2 = jnp.reshape(x, (M, D)).astype(jnp.float32)

    vmem_cap = _vmem_capacity_bytes()
    sel_tm, sel_tf, chunked = _select_tiling(M, D, Dff, vmem_cap)
    if tm is not None:
        sel_tm = tm
    if tf is not None:
        sel_tf = tf
        chunked = sel_tf != Dff
    tm, tf = sel_tm, sel_tf
    assert Dff % tf == 0, "d_ffn (after padding) must be divisible by tf"

    m_pad = _round_up(M, tm)
    if m_pad != M:
        x2 = jnp.pad(x2, ((0, m_pad - M), (0, 0)))

    vmem_limit = min(int(0.85 * vmem_cap), 128 * 1024 * 1024)

    if not chunked:
        # Weights-resident fast path: 1-D grid over token tiles; constant weight
        # block index -> weights DMA'd once and kept in VMEM; no accumulator.
        out = pl.pallas_call(
            ffn_kernel_resident,
            out_shape=jax.ShapeDtypeStruct((m_pad, D), jnp.float32),
            grid_spec=pltpu.PrefetchScalarGridSpec(
                num_scalar_prefetch=0,
                grid=(m_pad // tm,),
                in_specs=[
                    pl.BlockSpec((tm, D), lambda i: (i, 0)),      # x tile
                    pl.BlockSpec((D, Dff), lambda i: (0, 0)),     # W1^T (resident)
                    pl.BlockSpec((1, Dff), lambda i: (0, 0)),     # b1   (resident)
                    pl.BlockSpec((Dff, D), lambda i: (0, 0)),     # W2^T (resident)
                    pl.BlockSpec((1, D), lambda i: (0, 0)),       # b2   (resident)
                ],
                out_specs=pl.BlockSpec((tm, D), lambda i: (i, 0)),
            ),
            compiler_params=pltpu.CompilerParams(
                dimension_semantics=("parallel",),
                vmem_limit_bytes=vmem_limit,
            ),
        )(x2, w1t, b1r, w2t, b2r)
    else:
        # Streamed-weights path: Dff reduction chunks with f32 accumulator.
        grid = (m_pad // tm, Dff // tf)
        out = pl.pallas_call(
            ffn_kernel_chunked,
            out_shape=jax.ShapeDtypeStruct((m_pad, D), jnp.float32),
            grid_spec=pltpu.PrefetchScalarGridSpec(
                num_scalar_prefetch=0,
                grid=grid,
                in_specs=[
                    pl.BlockSpec((tm, D), lambda i, f: (i, 0)),   # x tile
                    pl.BlockSpec((D, tf), lambda i, f: (0, f)),   # W1^T chunk
                    pl.BlockSpec((1, tf), lambda i, f: (0, f)),   # b1 chunk
                    pl.BlockSpec((tf, D), lambda i, f: (f, 0)),   # W2^T chunk
                    pl.BlockSpec((1, D), lambda i, f: (0, 0)),    # b2 (resident)
                ],
                out_specs=pl.BlockSpec((tm, D), lambda i, f: (i, 0)),
                scratch_shapes=[pltpu.VMEM((tm, D), jnp.float32)],
            ),
            compiler_params=pltpu.CompilerParams(
                dimension_semantics=("parallel", "arbitrary"),
                vmem_limit_bytes=vmem_limit,
            ),
        )(x2, w1t, b1r, w2t, b2r)

    if m_pad != M:
        out = out[:M]
    return jnp.reshape(out, orig_shape)


# ----------------------------------------------------------------------------
# Pure-JAX reference + param init (torch Linear: xavier_uniform weight, bias 0)
# ----------------------------------------------------------------------------
def ffn_reference(x, w1, b1, w2, b2):
    h = jnp.maximum(x @ w1.T + b1, 0.0)     # F.threshold(x, 0, 0) == ReLU
    return h @ w2.T + b2


def xavier_uniform(key, shape):
    fan_out, fan_in = shape  # torch Linear weight layout: (out_features, in_features)
    bound = math.sqrt(6.0 / (fan_in + fan_out))
    return jax.random.uniform(key, shape, jnp.float32, -bound, bound)


# ----------------------------------------------------------------------------
if __name__ == "__main__":
    key = jax.random.PRNGKey(0)

    B, S, d_model, d_ffn = 2, 8, 32, 64
    k_x, k_w1, k_w2, k_b1, k_b2 = jax.random.split(key, 5)

    x = jax.random.normal(k_x, (B, S, d_model), jnp.float32)
    w1 = xavier_uniform(k_w1, (d_ffn, d_model))
    w2 = xavier_uniform(k_w2, (d_model, d_ffn))
    # Module initializes biases to 0; use small random biases to exercise the path.
    b1 = 0.1 * jax.random.normal(k_b1, (d_ffn,), jnp.float32)
    b2 = 0.1 * jax.random.normal(k_b2, (d_model,), jnp.float32)

    params = prepare_ffn_params(w1, b1, w2, b2)   # one-time weight prep (cached)
    out = ffn_forward(x, params)
    out = jax.block_until_ready(out)

    ref = ffn_reference(x, w1, b1, w2, b2)
    # bf16 MXU inputs with f32 accumulation -> ~1e-2 relative deviation vs f32.
    np.testing.assert_allclose(np.asarray(out), np.asarray(ref), rtol=2e-2, atol=2e-2)
    assert out.shape == x.shape

    print("KERNEL_OK")
</pallas_src>

<mosaic_0001>
module attributes {stable_mosaic.version = 11 : i64} {
  func.func @ffn_kernel_resident(%arg0: i32, %arg1: memref<16x32xf32, #tpu.memory_space<vmem>>, %arg2: memref<32x64xbf16, #tpu.memory_space<vmem>>, %arg3: memref<1x64xf32, #tpu.memory_space<vmem>>, %arg4: memref<64x32xbf16, #tpu.memory_space<vmem>>, %arg5: memref<1x32xf32, #tpu.memory_space<vmem>>, %arg6: memref<16x32xf32, #tpu.memory_space<vmem>>) attributes {dimension_semantics = [#tpu.dimension_semantics<parallel>], iteration_bounds = array<i64: 1>, scalar_prefetch = 0 : i64, scratch_operands = 0 : i64, tpu.core_type = #tpu.core_type<tc>, window_params = [{transform_indices = @transform_0, window_bounds = array<i64: 16, 32>}, {pipeline_mode = #tpu.pipeline_mode<synchronous>, transform_indices = @transform_1, window_bounds = array<i64: 32, 64>}, {pipeline_mode = #tpu.pipeline_mode<synchronous>, transform_indices = @transform_2, window_bounds = array<i64: 1, 64>}, {pipeline_mode = #tpu.pipeline_mode<synchronous>, transform_indices = @transform_3, window_bounds = array<i64: 64, 32>}, {pipeline_mode = #tpu.pipeline_mode<synchronous>, transform_indices = @transform_4, window_bounds = array<i64: 1, 32>}, {transform_indices = @transform_5, window_bounds = array<i64: 16, 32>}]} {
    %c0 = arith.constant 0 : index
    %c0_0 = arith.constant 0 : index
    %0 = vector.load %arg1[%c0, %c0_0] : memref<16x32xf32, #tpu.memory_space<vmem>>, vector<16x32xf32>
    %1 = arith.truncf %0 : vector<16x32xf32> to vector<16x32xbf16>
    %c0_1 = arith.constant 0 : index
    %c0_2 = arith.constant 0 : index
    %2 = vector.load %arg2[%c0_1, %c0_2] : memref<32x64xbf16, #tpu.memory_space<vmem>>, vector<32x64xbf16>
    %cst = arith.constant dense<0.000000e+00> : vector<16x64xf32>
    %3 = tpu.matmul %1, %2, %cst {dimension_numbers = #tpu.dot_dimension_numbers<[1], [0], [0], [1], [0, 0, 1, 1], [], []>} : vector<16x32xbf16>, vector<32x64xbf16>, vector<16x64xf32> -> vector<16x64xf32>
    %c0_3 = arith.constant 0 : index
    %c0_4 = arith.constant 0 : index
    %4 = vector.load %arg3[%c0_3, %c0_4] : memref<1x64xf32, #tpu.memory_space<vmem>>, vector<1x64xf32>
    %5 = vector.broadcast %4 : vector<1x64xf32> to vector<16x64xf32>
    %6 = arith.addf %3, %5 : vector<16x64xf32>
    %cst_5 = arith.constant 0.000000e+00 : f32
    %7 = vector.broadcast %cst_5 : f32 to vector<16x64xf32>
    %8 = arith.maximumf %6, %7 : vector<16x64xf32>
    %9 = arith.truncf %8 : vector<16x64xf32> to vector<16x64xbf16>
    %c0_6 = arith.constant 0 : index
    %c0_7 = arith.constant 0 : index
    %10 = vector.load %arg4[%c0_6, %c0_7] : memref<64x32xbf16, #tpu.memory_space<vmem>>, vector<64x32xbf16>
    %cst_8 = arith.constant dense<0.000000e+00> : vector<16x32xf32>
    %11 = tpu.matmul %9, %10, %cst_8 {dimension_numbers = #tpu.dot_dimension_numbers<[1], [0], [0], [1], [0, 0, 1, 1], [], []>} : vector<16x64xbf16>, vector<64x32xbf16>, vector<16x32xf32> -> vector<16x32xf32>
    %c0_9 = arith.constant 0 : index
    %c0_10 = arith.constant 0 : index
    %12 = vector.load %arg5[%c0_9, %c0_10] : memref<1x32xf32, #tpu.memory_space<vmem>>, vector<1x32xf32>
    %13 = vector.broadcast %12 : vector<1x32xf32> to vector<16x32xf32>
    %14 = arith.addf %11, %13 : vector<16x32xf32>
    %c0_11 = arith.constant 0 : index
    %c0_12 = arith.constant 0 : index
    %15 = vector.load %arg6[%c0_11, %c0_12] : memref<16x32xf32, #tpu.memory_space<vmem>>, vector<16x32xf32>
    tpu.vector_store %arg6[%c0_11, %c0_12], %14 {strides = array<i32>} : memref<16x32xf32, #tpu.memory_space<vmem>>, vector<16x32xf32>,
    return
  }
  func.func @transform_0(%arg0: i32) -> (i32, i32) {
    %c0_i32 = arith.constant 0 : i32
    %c0_i32_0 = arith.constant 0 : i32
    return %arg0, %c0_i32 : i32, i32
  }
  func.func @transform_1(%arg0: i32) -> (i32, i32) {
    %c0_i32 = arith.constant 0 : i32
    %c0_i32_0 = arith.constant 0 : i32
    %c0_i32_1 = arith.constant 0 : i32
    return %c0_i32, %c0_i32_0 : i32, i32
  }
  func.func @transform_2(%arg0: i32) -> (i32, i32) {
    %c0_i32 = arith.constant 0 : i32
    %c0_i32_0 = arith.constant 0 : i32
    %c0_i32_1 = arith.constant 0 : i32
    return %c0_i32, %c0_i32_0 : i32, i32
  }
  func.func @transform_3(%arg0: i32) -> (i32, i32) {
    %c0_i32 = arith.constant 0 : i32
    %c0_i32_0 = arith.constant 0 : i32
    %c0_i32_1 = arith.constant 0 : i32
    return %c0_i32, %c0_i32_0 : i32, i32
  }
  func.func @transform_4(%arg0: i32) -> (i32, i32) {
    %c0_i32 = arith.constant 0 : i32
    %c0_i32_0 = arith.constant 0 : i32
    %c0_i32_1 = arith.constant 0 : i32
    return %c0_i32, %c0_i32_0 : i32, i32
  }
  func.func @transform_5(%arg0: i32) -> (i32, i32) {
    %c0_i32 = arith.constant 0 : i32
    %c0_i32_0 = arith.constant 0 : i32
    return %arg0, %c0_i32 : i32, i32
  }
}

</mosaic_0001>

<llo_original>
// kernel: tpu_custom_call.1
$region0: #{tpu_custom_call.1}
  #allocation0 [shape = 'u32[]', space=smem, size = 0x4, offset = 0x4, fixed_abs, tag = 'smem constant byte address 0x4 - core index']
  #allocation1 [shape = 'u32[144,128]{1,0:T(1,128)}', space=vmem, size = 0x12000, scoped, tag = 'internal scratch']
  %s0 = inlined_call_operand.vmem [shape: f32[16,32], index: 0, kind: input, shape index: {}]
  %s1 = inlined_call_operand.vmem [shape: bf16[32,64], index: 1, kind: input, shape index: {}]
  %s2 = inlined_call_operand.vmem [shape: f32[1,64], index: 2, kind: input, shape index: {}]
  %s3 = inlined_call_operand.vmem [shape: bf16[64,32], index: 3, kind: input, shape index: {}]
  %s4 = inlined_call_operand.vmem [shape: f32[1,32], index: 4, kind: input, shape index: {}]
  %s5 = inlined_call_operand.hbm [shape: f32[16,32], index: 5, kind: output, shape index: {}]
  %s6 = sld [smem:[#allocation0]]
  $region30: #{tpu_custom_call.1} parent=0
    _
  %s8 = ssub.s32 1, %s6
  %s9 = scalar_select 0, %s8, %s6
  $region1: #{tpu_custom_call.1} parent=0
    #allocation2 [shape = 'u8[8192]{0}', space=vmem, size = 0x2000, scoped, tag = 'output window, operand 0, single buffered']
    #allocation3 [shape = 's32[1]{0}', space=sflag, size = 0x4, scoped, tag = 'scoped memory for tpu_custom_call.1']
    %10 = vsyncpa [#allocation3], 0
    // Predicated region
    $region2: #{tpu_custom_call.1} parent=1 // pred_check
      _
    $region3: #{tpu_custom_call.1} parent=1 // pred_check_branch
      %12 = sbr.rel (0) target = $region5
    $region4: #{tpu_custom_call.1} parent=1 // pred_region
      _
    $region5: #{tpu_custom_call.1} parent=1 // pred_fallthru
      _
    // Predicated region
    $region6: #{tpu_custom_call.1} parent=1 // pred_check
      _
    $region7: #{tpu_custom_call.1} parent=1 // pred_check_branch
      %14 = sbr.rel (0) target = $region9
    $region8: #{tpu_custom_call.1} parent=1 // pred_region
      _
    $region9: #{tpu_custom_call.1} parent=1 // pred_fallthru
      _
    // Predicated region
    $region10: #{tpu_custom_call.1} parent=1 // pred_check
      _
    $region11: #{tpu_custom_call.1} parent=1 // pred_check_branch
      %16 = sbr.rel (0) target = $region13
    $region12: #{tpu_custom_call.1} parent=1 // pred_region
      _
    $region13: #{tpu_custom_call.1} parent=1 // pred_fallthru
      _
    // Predicated region
    $region14: #{tpu_custom_call.1} parent=1 // pred_check
      _
    $region15: #{tpu_custom_call.1} parent=1 // pred_check_branch
      %18 = sbr.rel (0) target = $region17
    $region16: #{tpu_custom_call.1} parent=1 // pred_region
      _
    $region17: #{tpu_custom_call.1} parent=1 // pred_fallthru
      _
    // Predicated region
    $region18: #{tpu_custom_call.1} parent=1 // pred_check
      _
    $region19: #{tpu_custom_call.1} parent=1 // pred_check_branch
      %20 = sbr.rel (0) target = $region21
    $region20: #{tpu_custom_call.1} parent=1 // pred_region
      _
    $region21: #{tpu_custom_call.1} parent=1 // pred_fallthru
      _
    %v22 = vld [vmem:[%s0] sm:$0xff]
    %v23 = vld [vmem:[%s0 + $0x8] sm:$0xff]
    %v24 = vpack.c.bf16 %v23, %v22
    %v25 = vld [vmem:[%s1] sm:$0xf]
    %v26 = vld [vmem:[%s1 + $0x4] sm:$0xf]
    %v27 = vld [vmem:[%s1 + $0x8] sm:$0xf]
    %v28 = vld [vmem:[%s1 + $0xc] sm:$0xf]
    %v29 = vld [vmem:[%s2] sm:$0x1]
    %v31 = vlaneseq
    %v32 = vshrl.u32 %v31, 7
    %v33 = vsub.s32 0, %v32
    %v34 = vrot.slane %v29, %v33
    %v40 = vunpack.c.l.b16 %v25
    %v41 = vunpack.c.l.b16 %v26
    %v42 = vunpack.c.l.b16 %v27
    %v43 = vunpack.c.l.b16 %v28
    %v44 = vpack.c.b16 %v41, %v40
    %v45 = vpack.c.b16 %v43, %v42
    %vm48 = vcmask 261120
    %v50 = vsel %vm48, %v24, 0
    %52 = vmatprep.subr.bf16.mxu0 0
    %53 = vmatpush1.bf16.msra.mxu0 %v44
    %54 = vmatprep.subr.bf16.mxu0 0
    %55 = vmatpush1.bf16.msra.mxu0 %v45
    %56 = vmatprep.subr.bf16.mxu0 0
    %57 = vmatpush1.bf16.msra.mxu0 0
    %58 = vmatprep.subr.bf16.mxu0 0
    %59 = vmatpush1.bf16.msra.mxu0 0
    %60 = vmatprep.subr.bf16.mxu0 0
    %61 = vmatpush1.bf16.msra.mxu0 0
    %62 = vmatprep.subr.bf16.mxu0 0
    %63 = vmatpush1.bf16.msra.mxu0 0
    %64 = vmatprep.subr.bf16.mxu0 0
    %65 = vmatpush1.bf16.msra.mxu0 0
    %66 = vmatprep.subr.bf16.mxu0 0
    %67 = vmatpush1.bf16.msra.mxu0 0
    %68 = vmatprep.subr.bf16.mxu0 0
    %69 = vmatpush1.bf16.msra.mxu0 0
    %70 = vmatprep.subr.bf16.mxu0 0
    %71 = vmatpush1.bf16.msra.mxu0 0
    %72 = vmatprep.subr.bf16.mxu0 0
    %73 = vmatpush1.bf16.msra.mxu0 0
    %74 = vmatprep.subr.bf16.mxu0 0
    %75 = vmatpush1.bf16.msra.mxu0 0
    %76 = vmatprep.subr.bf16.mxu0 0
    %77 = vmatpush1.bf16.msra.mxu0 0
    %78 = vmatprep.subr.bf16.mxu0 0
    %79 = vmatpush1.bf16.msra.mxu0 0
    %80 = vmatprep.subr.bf16.mxu0 0
    %81 = vmatpush1.bf16.msra.mxu0 0
    %82 = vmatprep.subr.bf16.mxu0 0
    %83 = vmatpush1.bf16.msra.mxu0 0
    %84 = vmatprep.mubr.bf16.mxu0 0
    %85 = vmatmul.mubr.bf16.gmra.mrb[0].mxu0 %v50
    %v86 = vpop.f32.mrb[0].mxu0
    %v87 = vadd.f32 %v34, %v86
    %v88 = vpop.f32.mrb[0].mxu0
    %v89 = vpop.f32.mrb[0].mxu0
    %v90 = vadd.f32 %v34, %v89
    %v91 = vpop.f32.mrb[0].mxu0
    %92 = vdwg.mxu0
    %v93 = vmax.f32 %v87, 0.0
    %v94 = vmax.f32 %v90, 0.0
    %v95 = vpack.c.bf16 %v94, %v93
    %v96 = vld [vmem:[%s3] sm:$0xf]
    %v97 = vld [vmem:[%s3 + $0x4] sm:$0xf]
    %v98 = vld [vmem:[%s3 + $0x8] sm:$0xf]
    %v99 = vld [vmem:[%s3 + $0xc] sm:$0xf]
    %v100 = vld [vmem:[%s3 + $0x10] sm:$0xf]
    %v101 = vld [vmem:[%s3 + $0x14] sm:$0xf]
    %v102 = vld [vmem:[%s3 + $0x18] sm:$0xf]
    %v103 = vld [vmem:[%s3 + $0x1c] sm:$0xf]
    %v104 = vld [vmem:[%s4] sm:$0x1]
    %v106 = vlaneseq
    %v107 = vshrl.u32 %v106, 7
    %v108 = vsub.s32 0, %v107
    %v109 = vrot.slane %v104, %v108
    %v119 = vunpack.c.l.b16 %v96
    %v120 = vunpack.c.l.b16 %v97
    %v121 = vunpack.c.l.b16 %v98
    %v122 = vunpack.c.l.b16 %v99
    %v123 = vunpack.c.l.b16 %v100
    %v124 = vunpack.c.l.b16 %v101
    %v125 = vunpack.c.l.b16 %v102
    %v126 = vunpack.c.l.b16 %v103
    %v127 = vpack.c.b16 %v120, %v119
    %v128 = vpack.c.b16 %v122, %v121
    %v129 = vpack.c.b16 %v124, %v123
    %v130 = vpack.c.b16 %v126, %v125
    %vm135 = vcmask 523264
    %v137 = vsel %vm135, %v95, 0
    %139 = vmatprep.subr.bf16.mxu0 0
    %140 = vmatpush1.bf16.msra.mxu0 %v127
    %141 = vmatprep.subr.bf16.mxu0 0
    %142 = vmatpush1.bf16.msra.mxu0 %v128
    %143 = vmatprep.subr.bf16.mxu0 0
    %144 = vmatpush1.bf16.msra.mxu0 %v129
    %145 = vmatprep.subr.bf16.mxu0 0
    %146 = vmatpush1.bf16.msra.mxu0 %v130
    %147 = vmatprep.subr.bf16.mxu0 0
    %148 = vmatpush1.bf16.msra.mxu0 0
    %149 = vmatprep.subr.bf16.mxu0 0
    %150 = vmatpush1.bf16.msra.mxu0 0
    %151 = vmatprep.subr.bf16.mxu0 0
    %152 = vmatpush1.bf16.msra.mxu0 0
    %153 = vmatprep.subr.bf16.mxu0 0
    %154 = vmatpush1.bf16.msra.mxu0 0
    %155 = vmatprep.subr.bf16.mxu0 0
    %156 = vmatpush1.bf16.msra.mxu0 0
    %157 = vmatprep.subr.bf16.mxu0 0
    %158 = vmatpush1.bf16.msra.mxu0 0
    %159 = vmatprep.subr.bf16.mxu0 0
    %160 = vmatpush1.bf16.msra.mxu0 0
    %161 = vmatprep.subr.bf16.mxu0 0
    %162 = vmatpush1.bf16.msra.mxu0 0
    %163 = vmatprep.subr.bf16.mxu0 0
    %164 = vmatpush1.bf16.msra.mxu0 0
    %165 = vmatprep.subr.bf16.mxu0 0
    %166 = vmatpush1.bf16.msra.mxu0 0
    %167 = vmatprep.subr.bf16.mxu0 0
    %168 = vmatpush1.bf16.msra.mxu0 0
    %169 = vmatprep.subr.bf16.mxu0 0
    %170 = vmatpush1.bf16.msra.mxu0 0
    %171 = vmatprep.mubr.bf16.mxu0 0
    %172 = vmatmul.mubr.bf16.gmra.mrb[0].mxu0 %v137
    %v173 = vpop.f32.mrb[0].mxu0
    %v174 = vadd.f32 %v109, %v173
    %v175 = vpop.f32.mrb[0].mxu0
    %v176 = vpop.f32.mrb[0].mxu0
    %v177 = vadd.f32 %v109, %v176
    %v178 = vpop.f32.mrb[0].mxu0
    %179 = vdwg.mxu0
    %180 = vst.msk [vmem:[#allocation2] sm:$0xff] %vm48, %v174
    %181 = vst.msk [vmem:[#allocation2 + $0x8] sm:$0xff] %vm48, %v177
    // Predicated region
    $region22: #{tpu_custom_call.1} parent=1 // pred_check
      _
    $region23: #{tpu_custom_call.1} parent=1 // pred_check_branch
      %183 = sbr.rel (0) target = $region25
    $region24: #{tpu_custom_call.1} parent=1 // pred_region
      %s185 = ssub.s32 256, 256
      %186 = vsyncadd [#allocation3], %s185
      %s187 = sshll.u32 [#allocation2], 4
      %s188 = int_to_ptr.vmem [resolvable:$true] %s187
      %193 = dma.vmem_to_hbm [thread:$0]  %s188, 256, %s5, [#allocation3], 128, 128, 8
    $region25: #{tpu_custom_call.1} parent=1 // pred_fallthru
      _
    // Predicated region
    $region26: #{tpu_custom_call.1} parent=1 // pred_check
      _
    $region27: #{tpu_custom_call.1} parent=1 // pred_check_branch
      %195 = sbr.rel (0) target = $region29
    $region28: #{tpu_custom_call.1} parent=1 // pred_region
      %196 = dma.done [#allocation3], 256
    $region29: #{tpu_custom_call.1} parent=1 // pred_fallthru
      _
    %197 = vsyncpa [#allocation3], 1

</llo_original>
